<compile_context>
chip_gen: v6e
topology: v6e:2x2x1
jax: 0.10.0
libtpu: 0.0.40
codegen_flags: <defaults>
</compile_context>

<pallas_src>
import jax
import jax.numpy as jnp
from jax.experimental import pallas as pl
from jax.experimental.pallas import tpu as pltpu


# --------------------------------------------------------------------------- #
# Buffer precompute (module __init__, plain JAX — not part of forward)
# --------------------------------------------------------------------------- #
def precompute_freq_cis(dim: int, end: int, theta: float) -> jax.Array:
    exponents = jnp.arange(0, dim, 2)[: dim // 2].astype(jnp.float32) / dim
    freqs = 1.0 / (theta ** exponents)
    t = jnp.arange(end, dtype=jnp.float32)
    angles = jnp.outer(t, freqs).astype(jnp.float32)
    cos, sin = jnp.cos(angles), jnp.sin(angles)
    return jnp.stack((cos, -sin, sin, cos), axis=-1).reshape(end, dim // 2, 2, 2)


def _round_up(x: int, m: int) -> int:
    return ((x + m - 1) // m) * m


# --------------------------------------------------------------------------- #
# Kernels
# --------------------------------------------------------------------------- #
def _copy_rows_kernel(table_ref, o_ref):
    # Streaming copy of one lane-dense row tile (prefix slice).
    o_ref[...] = table_ref[...]


def _gather_vmem_kernel(ids_ref, table_ref, o_ref):
    # Table fully resident in VMEM; gather TILE_N rows per grid step.
    tile_n = o_ref.shape[0]
    base = pl.program_id(0) * tile_n

    @pl.loop(0, tile_n)
    def _(r):
        row = ids_ref[base + r]
        o_ref[pl.ds(r, 1), :] = table_ref[pl.ds(row, 1), :]


def _gather_dma_kernel(ids_ref, table_hbm, o_ref, buf, sems):
    # Table stays in HBM; per-row DMA gather into a VMEM tile, one dense store.
    tile_n = o_ref.shape[0]
    base = pl.program_id(0) * tile_n

    @pl.loop(0, tile_n)
    def _(r):
        row = ids_ref[base + r]
        pltpu.make_async_copy(table_hbm.at[row], buf.at[r], sems.at[r]).start()

    @pl.loop(0, tile_n)
    def _(r):
        pltpu.make_async_copy(table_hbm.at[0], buf.at[r], sems.at[r]).wait()

    o_ref[...] = buf[...]
    # TODO(synk): prefetch the next id-tile's rows while storing this one
    # (deeper manual pipelining) if the gather ever becomes latency-bound.


# --------------------------------------------------------------------------- #
# forward(seqlen=...)  ==  freq_cis[:seqlen]
# --------------------------------------------------------------------------- #
def rotary_slice(freq_cis: jax.Array, seqlen: int,
                 target_tile_bytes: int = 2 << 20) -> jax.Array:
    end, half, r0, r1 = freq_cis.shape
    assert 0 < seqlen <= end, "seqlen must be in (0, max_seqlen]"
    flat = half * r0 * r1                       # = 2 * head_dim, lane-dense
    table = freq_cis.reshape(end, flat)         # free trailing-dim collapse
    itemsize = freq_cis.dtype.itemsize
    row_bytes = flat * itemsize

    # Row tile: ~2 MiB, multiple of 8 sublanes, no larger than the request, and
    # capped at half the request (rounded up) so the grid stays >= 2 blocks for
    # v7x's two TensorCores whenever there is enough work to split.
    rows_budget = max(8, (target_tile_bytes // row_bytes) // 8 * 8)
    tile = max(8, min(rows_budget,
                      _round_up(seqlen, 8),
                      _round_up((seqlen + 1) // 2, 8)))
    grid = (pl.cdiv(seqlen, tile),)

    bytes_accessed = 2 * seqlen * row_bytes
    out = pl.pallas_call(
        _copy_rows_kernel,
        out_shape=jax.ShapeDtypeStruct((seqlen, flat), freq_cis.dtype),
        grid_spec=pltpu.PrefetchScalarGridSpec(
            num_scalar_prefetch=0,
            grid=grid,
            in_specs=[pl.BlockSpec((tile, flat), lambda i: (i, 0))],
            out_specs=pl.BlockSpec((tile, flat), lambda i: (i, 0)),
        ),
        compiler_params=pltpu.CompilerParams(
            dimension_semantics=("parallel",),
            # <= ~8 MiB of double-buffered tiles; safe on every generation.
            vmem_limit_bytes=32 * 1024 * 1024,
        ),
        cost_estimate=pl.CostEstimate(
            flops=0, transcendentals=0, bytes_accessed=bytes_accessed),
    )(table)
    return out.reshape(seqlen, half, r0, r1)


# --------------------------------------------------------------------------- #
# forward(token_id=...)  ==  freq_cis[token_id]
# --------------------------------------------------------------------------- #
def rotary_gather(freq_cis: jax.Array, token_id: jax.Array, *,
                  vmem_table_budget: int = 8 * 1024 * 1024,
                  force_dma: bool = False) -> jax.Array:
    end, half, r0, r1 = freq_cis.shape
    flat = half * r0 * r1
    itemsize = freq_cis.dtype.itemsize
    table = freq_cis.reshape(end, flat)

    ids = token_id.reshape(-1).astype(jnp.int32)
    ids = jnp.clip(ids, 0, end - 1)             # bounds-safety for the DMAs
    n = int(ids.shape[0])

    table_bytes = end * flat * itemsize
    use_vmem = (not force_dma) and (table_bytes <= vmem_table_budget)

    # Block of token ids handled per grid step (multiple of 8 sublanes).
    tile = min(128 if use_vmem else 64, _round_up(n, 8))
    grid = pl.cdiv(n, tile)

    # Pad ids so in-kernel SMEM reads never go out of bounds on the last
    # (ragged) block; padded rows gather row 0 and are masked on writeback.
    n_pad = grid * tile
    if n_pad != n:
        ids = jnp.pad(ids, (0, n_pad - n))

    out_bytes = n * flat * itemsize
    if use_vmem:
        out = pl.pallas_call(
            _gather_vmem_kernel,
            out_shape=jax.ShapeDtypeStruct((n, flat), freq_cis.dtype),
            grid_spec=pltpu.PrefetchScalarGridSpec(
                num_scalar_prefetch=1,          # token ids -> SMEM
                grid=(grid,),
                # Full-array block, same index every step -> table is DMA'd
                # into VMEM once and stays resident.
                in_specs=[pl.BlockSpec((end, flat), lambda i, ids_ref: (0, 0))],
                out_specs=pl.BlockSpec((tile, flat), lambda i, ids_ref: (i, 0)),
            ),
            compiler_params=pltpu.CompilerParams(
                dimension_semantics=("parallel",)),
            cost_estimate=pl.CostEstimate(
                flops=0, transcendentals=0,
                bytes_accessed=table_bytes + out_bytes),
        )(ids, table)
    else:
        out = pl.pallas_call(
            _gather_dma_kernel,
            out_shape=jax.ShapeDtypeStruct((n, flat), freq_cis.dtype),
            grid_spec=pltpu.PrefetchScalarGridSpec(
                num_scalar_prefetch=1,          # token ids -> SMEM
                grid=(grid,),
                in_specs=[pl.BlockSpec(memory_space=pl.ANY)],   # table in HBM
                out_specs=pl.BlockSpec((tile, flat), lambda i, ids_ref: (i, 0)),
                scratch_shapes=[
                    pltpu.VMEM((tile, flat), freq_cis.dtype),
                    pltpu.SemaphoreType.DMA((tile,)),
                ],
            ),
            compiler_params=pltpu.CompilerParams(
                dimension_semantics=("arbitrary",)),
            cost_estimate=pl.CostEstimate(
                flops=0, transcendentals=0, bytes_accessed=2 * out_bytes),
        )(ids, table)

    return out.reshape(*token_id.shape, half, r0, r1)


# --------------------------------------------------------------------------- #
# Module wrapper
# --------------------------------------------------------------------------- #
class RotaryEmbedding:
    """JAX/Pallas port of the PyTorch RotaryEmbedding module."""

    def __init__(self, theta: float, head_dim: int, max_seqlen: int):
        self.theta = theta
        self.head_dim = head_dim
        self.max_seqlen = max_seqlen
        self.freq_cis = precompute_freq_cis(head_dim, max_seqlen, theta)

    def reset_parameters(self):
        self.freq_cis = precompute_freq_cis(self.head_dim, self.max_seqlen, self.theta)

    def __call__(self, seqlen=None, token_id=None):
        assert seqlen is None or token_id is None, (
            "Either seqlen or token_id must be provided.")
        if token_id is not None:
            return rotary_gather(self.freq_cis, token_id)
        elif seqlen is not None:
            return rotary_slice(self.freq_cis, seqlen)
        raise ValueError("Either seqlen or token_id must be provided.")


if __name__ == "__main__":
    key = jax.random.PRNGKey(0)
    theta = 10000.0
    head_dim = 64          # -> lane-dense flat width of 2*head_dim = 128
    max_seqlen = 64
    batch, seq = 2, 8

    rope = RotaryEmbedding(theta=theta, head_dim=head_dim, max_seqlen=max_seqlen)

    # Path 1a: forward(seqlen=...)  ==  freq_cis[:seqlen]
    out_slice = jax.block_until_ready(rope(seqlen=seq))
    assert out_slice.shape == (seq, head_dim // 2, 2, 2)
    assert out_slice.dtype == rope.freq_cis.dtype
    assert jnp.array_equal(out_slice, rope.freq_cis[:seq])

    # Path 1b: ragged (seqlen < 8) prefix — exercises partial-block masking.
    out_slice5 = jax.block_until_ready(rope(seqlen=5))
    assert out_slice5.shape == (5, head_dim // 2, 2, 2)
    assert jnp.array_equal(out_slice5, rope.freq_cis[:5])

    # Path 2a: forward(token_id=...)  ==  freq_cis[token_id]  (VMEM-resident table)
    token_id = jax.random.randint(key, (batch, seq), 0, max_seqlen, dtype=jnp.int32)
    out_gather = jax.block_until_ready(rope(token_id=token_id))
    ref_gather = rope.freq_cis[token_id]
    assert out_gather.shape == (batch, seq, head_dim // 2, 2, 2)
    assert jnp.array_equal(out_gather, ref_gather)

    # Path 2b: same gather through the large-table manual-DMA fallback.
    out_gather_dma = jax.block_until_ready(
        rotary_gather(rope.freq_cis, token_id, force_dma=True))
    assert jnp.array_equal(out_gather_dma, ref_gather)

    print("KERNEL_OK")
</pallas_src>

<mosaic_0001>
module attributes {stable_mosaic.version = 11 : i64} {
  func.func @_copy_rows_kernel(%arg0: i32, %arg1: memref<8x128xf32, #tpu.memory_space<vmem>>, %arg2: memref<8x128xf32, #tpu.memory_space<vmem>>) attributes {dimension_semantics = [#tpu.dimension_semantics<parallel>], iteration_bounds = array<i64: 1>, scalar_prefetch = 0 : i64, scratch_operands = 0 : i64, tpu.core_type = #tpu.core_type<tc>, window_params = [{transform_indices = @transform_0, window_bounds = array<i64: 8, 128>}, {transform_indices = @transform_1, window_bounds = array<i64: 8, 128>}]} {
    %c0 = arith.constant 0 : index
    %c0_0 = arith.constant 0 : index
    %0 = vector.load %arg1[%c0, %c0_0] : memref<8x128xf32, #tpu.memory_space<vmem>>, vector<8x128xf32>
    %c0_1 = arith.constant 0 : index
    %c0_2 = arith.constant 0 : index
    %1 = vector.load %arg2[%c0_1, %c0_2] : memref<8x128xf32, #tpu.memory_space<vmem>>, vector<8x128xf32>
    tpu.vector_store %arg2[%c0_1, %c0_2], %0 {strides = array<i32>} : memref<8x128xf32, #tpu.memory_space<vmem>>, vector<8x128xf32>,
    return
  }
  func.func @transform_0(%arg0: i32) -> (i32, i32) {
    %c0_i32 = arith.constant 0 : i32
    %c0_i32_0 = arith.constant 0 : i32
    return %arg0, %c0_i32 : i32, i32
  }
  func.func @transform_1(%arg0: i32) -> (i32, i32) {
    %c0_i32 = arith.constant 0 : i32
    %c0_i32_0 = arith.constant 0 : i32
    return %arg0, %c0_i32 : i32, i32
  }
}

</mosaic_0001>

<llo_original>
// kernel: tpu_custom_call.1
$region0: #{tpu_custom_call.1}
  #allocation0 [shape = 'u32[]', space=smem, size = 0x4, offset = 0x4, fixed_abs, tag = 'smem constant byte address 0x4 - core index']
  #allocation1 [shape = 'u32[144,128]{1,0:T(1,128)}', space=vmem, size = 0x12000, scoped, tag = 'internal scratch']
  %s0 = inlined_call_operand.hbm [shape: f32[64,128], index: 0, kind: input, shape index: {}]
  %s1 = inlined_call_operand.hbm [shape: f32[8,128], index: 1, kind: output, shape index: {}]
  %s2 = sld [smem:[#allocation0]]
  $region18: #{tpu_custom_call.1} parent=0
    _
  %s4 = ssub.s32 1, %s2
  %s5 = scalar_select 0, %s4, %s2
  $region1: #{tpu_custom_call.1} parent=0
    #allocation2 [shape = 'u8[4096]{0}', space=vmem, size = 0x1000, scoped, tag = 'input window, operand 0, single buffered']
    #allocation3 [shape = 's32[1]{0}', space=sflag, size = 0x4, scoped, tag = 'scoped memory for tpu_custom_call.1']
    #allocation4 [shape = 's32[1]{0}', space=sflag, size = 0x4, scoped, tag = 'scoped memory for tpu_custom_call.1']
    #allocation5 [shape = 'u8[4096]{0}', space=vmem, size = 0x1000, scoped, tag = 'output window, operand 0, single buffered']
    %6 = vsyncpa [#allocation3], 0
    %7 = vsyncpa [#allocation4], 0
    // Predicated region
    $region2: #{tpu_custom_call.1} parent=1 // pred_check
      _
    $region3: #{tpu_custom_call.1} parent=1 // pred_check_branch
      %9 = sbr.rel (0) target = $region5
    $region4: #{tpu_custom_call.1} parent=1 // pred_region
      %s11 = ssub.s32 128, 128
      %12 = vsyncadd [#allocation3], %s11
      %s14 = sshll.u32 [#allocation2], 4
      %s15 = int_to_ptr.vmem [resolvable:$true] %s14
      %17 = dma.hbm_to_vmem [thread:$0]  %s0, 128, %s15, [#allocation3]
    $region5: #{tpu_custom_call.1} parent=1 // pred_fallthru
      _
    // Predicated region
    $region6: #{tpu_custom_call.1} parent=1 // pred_check
      _
    $region7: #{tpu_custom_call.1} parent=1 // pred_check_branch
      %19 = sbr.rel (0) target = $region9
    $region8: #{tpu_custom_call.1} parent=1 // pred_region
      %20 = dma.done [#allocation3], 128
    $region9: #{tpu_custom_call.1} parent=1 // pred_fallthru
      _
    %v21 = vld [vmem:[#allocation2] sm:$0xff]
    %22 = vst [vmem:[#allocation5] sm:$0xff] %v21
    // Predicated region
    $region10: #{tpu_custom_call.1} parent=1 // pred_check
      _
    $region11: #{tpu_custom_call.1} parent=1 // pred_check_branch
      %24 = sbr.rel (0) target = $region13
    $region12: #{tpu_custom_call.1} parent=1 // pred_region
      %s26 = ssub.s32 128, 128
      %27 = vsyncadd [#allocation4], %s26
      %s29 = sshll.u32 [#allocation5], 4
      %s30 = int_to_ptr.vmem [resolvable:$true] %s29
      %32 = dma.vmem_to_hbm [thread:$0]  %s30, 128, %s1, [#allocation4]
    $region13: #{tpu_custom_call.1} parent=1 // pred_fallthru
      _
    // Predicated region
    $region14: #{tpu_custom_call.1} parent=1 // pred_check
      _
    $region15: #{tpu_custom_call.1} parent=1 // pred_check_branch
      %34 = sbr.rel (0) target = $region17
    $region16: #{tpu_custom_call.1} parent=1 // pred_region
      %35 = dma.done [#allocation4], 128
    $region17: #{tpu_custom_call.1} parent=1 // pred_fallthru
      _
    %36 = vsyncpa [#allocation3], 1
    %37 = vsyncpa [#allocation4], 1

</llo_original>
